<compile_context>
chip_gen: v7x
topology: tpu7x:2x2x1
jax: 0.10.0
libtpu: 0.0.40
codegen_flags: <defaults>
</compile_context>

<pallas_src>
import functools

import jax
import jax.numpy as jnp
from jax.experimental import pallas as pl
from jax.experimental.pallas import tpu as pltpu


def _tokenizer_kernel(x_ref, w_ref, o_ref, xpad_ref, *,
                      kernel_size, stride, padding, l_in, l_out, b_blk):
    """One block of batch elements per grid step.

    x_ref:    (b_blk, C_in, L)          native NCW input block (VMEM)
    w_ref:    (C_out, K*C_in)           flattened conv weight (VMEM, resident)
    o_ref:    (b_blk, C_out, L_out)     output block (VMEM), lane-dense last dim
    xpad_ref: (b_blk, C_in, L+2*pad)    zero-padded scratch (VMEM)
    """
    # In-kernel zero padding: zero the scratch once, copy the interior.
    xpad_ref[...] = jnp.zeros_like(xpad_ref)
    xpad_ref[:, :, padding:padding + l_in] = x_ref[...]

    w = w_ref[...]  # (C_out, K*C_in)

    for b in range(b_blk):  # static unroll, b_blk is small
        # im2col over the K taps -> (K*C_in, L_out). Contiguous lane reads
        # for stride == 1 (the common tokenizer config).
        taps = []
        for kk in range(kernel_size):
            if stride == 1:
                taps.append(xpad_ref[b, :, kk:kk + l_out])
            else:
                # TODO(synk): for stride > 1, a wrapper-side de-striding
                # reshape would make these reads contiguous as well.
                taps.append(xpad_ref[b, :, pl.ds(kk, l_out, stride=stride)])
        cols = taps[0] if kernel_size == 1 else jnp.concatenate(taps, axis=0)

        acc = jnp.dot(w, cols, preferred_element_type=jnp.float32)
        # ReLU from conv_layers; the second ReLU in forward() is a no-op on an
        # already-ReLU'd tensor, so a single fused max suffices.
        o_ref[b] = jnp.maximum(acc, 0.0).astype(o_ref.dtype)


def tokenizer_forward(x_ncw, weight_oik, *, stride, padding, b_blk=None):
    """Pallas implementation of Tokenizer.forward.

    x_ncw:      (N, C_in, L)       -- PyTorch NCW layout (kept as-is)
    weight_oik: (C_out, C_in, K)   -- PyTorch Conv1d weight layout
    returns:    (N, C_out, L_out)  -- PyTorch NCW layout, no transposes needed
    """
    n, c_in, l_in = x_ncw.shape
    c_out, c_in_w, k = weight_oik.shape
    assert c_in == c_in_w

    l_pad = l_in + 2 * padding
    l_out = (l_pad - k) // stride + 1

    # Flatten the tiny weight to a single 2D (C_out, K*C_in) VMEM slab; row
    # ordering matches the in-kernel tap-major im2col concatenation.
    w_flat = jnp.transpose(weight_oik, (0, 2, 1)).reshape(c_out, k * c_in)

    if b_blk is None:
        # A few batch elements per grid step (amortize per-step overhead),
        # but keep >= 2 grid points when possible for v7x's two TensorCores.
        b_blk = max(1, min(8, pl.cdiv(n, 2)))
    grid = (pl.cdiv(n, b_blk),)

    kernel = functools.partial(
        _tokenizer_kernel,
        kernel_size=k, stride=stride, padding=padding,
        l_in=l_in, l_out=l_out, b_blk=b_blk,
    )

    return pl.pallas_call(
        kernel,
        out_shape=jax.ShapeDtypeStruct((n, c_out, l_out), x_ncw.dtype),
        grid_spec=pltpu.PrefetchScalarGridSpec(
            num_scalar_prefetch=0,
            grid=grid,
            in_specs=[
                pl.BlockSpec((b_blk, c_in, l_in), lambda i: (i, 0, 0)),
                pl.BlockSpec((c_out, k * c_in), lambda i: (0, 0)),
            ],
            out_specs=pl.BlockSpec((b_blk, c_out, l_out), lambda i: (i, 0, 0)),
            scratch_shapes=[pltpu.VMEM((b_blk, c_in, l_pad), x_ncw.dtype)],
        ),
        compiler_params=pltpu.CompilerParams(
            dimension_semantics=("parallel",),
        ),
    )(x_ncw, w_flat)


def _reference_forward(x_ncw, weight_oik, *, stride, padding):
    """Pure-JAX reference (lax conv) for a correctness check."""
    out = jax.lax.conv_general_dilated(
        x_ncw,
        weight_oik,
        window_strides=(stride,),
        padding=[(padding, padding)],
        dimension_numbers=("NCH", "OIH", "NCH"),
    )
    out = jnp.maximum(out, 0.0)   # activation in conv_layers
    out = jnp.maximum(out, 0.0)   # self.activation in forward (no-op)
    return out


if __name__ == "__main__":
    # Module config (constructor args of Tokenizer).
    kernel_size, stride, padding = 3, 1, 1
    n_input_channels, n_output_channels = 4, 8

    # Input shape (N, C_in, L) — PyTorch NCW.
    batch, length = 2, 16

    key = jax.random.PRNGKey(0)
    kx, kw = jax.random.split(key)

    x = jax.random.normal(
        kx, (batch, n_input_channels, length), dtype=jnp.float32
    )

    # Deterministic kaiming_normal_ equivalent: std = sqrt(2 / fan_in),
    # fan_in = C_in * K (conv_bias=False, so no bias).
    fan_in = n_input_channels * kernel_size
    weight = jax.random.normal(
        kw, (n_output_channels, n_input_channels, kernel_size),
        dtype=jnp.float32,
    ) * jnp.sqrt(2.0 / fan_in)

    out = tokenizer_forward(x, weight, stride=stride, padding=padding)
    out = jax.block_until_ready(out)

    ref = _reference_forward(x, weight, stride=stride, padding=padding)
    l_out = (length + 2 * padding - kernel_size) // stride + 1
    assert out.shape == ref.shape == (batch, n_output_channels, l_out)
    assert jnp.allclose(out, ref, atol=1e-5, rtol=1e-5)

    print("KERNEL_OK")
</pallas_src>

<mosaic_0001>
module attributes {stable_mosaic.version = 11 : i64} {
  func.func @_tokenizer_kernel(%arg0: i32, %arg1: memref<1x4x16xf32, #tpu.memory_space<vmem>>, %arg2: memref<8x12xf32, #tpu.memory_space<vmem>>, %arg3: memref<1x8x16xf32, #tpu.memory_space<vmem>>, %arg4: memref<1x4x18xf32, #tpu.memory_space<vmem>>) attributes {dimension_semantics = [#tpu.dimension_semantics<parallel>], iteration_bounds = array<i64: 2>, scalar_prefetch = 0 : i64, scratch_operands = 1 : i64, tpu.core_type = #tpu.core_type<tc>, window_params = [{transform_indices = @transform_0, window_bounds = array<i64: 1, 4, 16>}, {pipeline_mode = #tpu.pipeline_mode<synchronous>, transform_indices = @transform_1, window_bounds = array<i64: 8, 12>}, {transform_indices = @transform_2, window_bounds = array<i64: 1, 8, 16>}]} {
    %cst = arith.constant 0.000000e+00 : f32
    %0 = vector.broadcast %cst : f32 to vector<1x4x18xf32>
    %c0 = arith.constant 0 : index
    %c0_0 = arith.constant 0 : index
    %c0_1 = arith.constant 0 : index
    %1 = vector.load %arg4[%c0, %c0_0, %c0_1] : memref<1x4x18xf32, #tpu.memory_space<vmem>>, vector<1x4x18xf32>
    tpu.vector_store %arg4[%c0, %c0_0, %c0_1], %0 {strides = array<i32>} : memref<1x4x18xf32, #tpu.memory_space<vmem>>, vector<1x4x18xf32>,
    %c0_2 = arith.constant 0 : index
    %c0_3 = arith.constant 0 : index
    %c0_4 = arith.constant 0 : index
    %2 = vector.load %arg1[%c0_2, %c0_3, %c0_4] : memref<1x4x16xf32, #tpu.memory_space<vmem>>, vector<1x4x16xf32>
    %c0_5 = arith.constant 0 : index
    %c0_6 = arith.constant 0 : index
    %c1 = arith.constant 1 : index
    %3 = vector.load %arg4[%c0_5, %c0_6, %c1] : memref<1x4x18xf32, #tpu.memory_space<vmem>>, vector<1x4x16xf32>
    tpu.vector_store %arg4[%c0_5, %c0_6, %c1], %2 {strides = array<i32>} : memref<1x4x18xf32, #tpu.memory_space<vmem>>, vector<1x4x16xf32>,
    %c0_7 = arith.constant 0 : index
    %c0_8 = arith.constant 0 : index
    %4 = vector.load %arg2[%c0_7, %c0_8] : memref<8x12xf32, #tpu.memory_space<vmem>>, vector<8x12xf32>
    %c0_9 = arith.constant 0 : index
    %c0_10 = arith.constant 0 : index
    %c0_11 = arith.constant 0 : index
    %5 = vector.load %arg4[%c0_9, %c0_10, %c0_11] : memref<1x4x18xf32, #tpu.memory_space<vmem>>, vector<1x4x16xf32>
    %6 = vector.shape_cast %5 : vector<1x4x16xf32> to vector<4x16xf32>
    %c0_12 = arith.constant 0 : index
    %c0_13 = arith.constant 0 : index
    %c1_14 = arith.constant 1 : index
    %7 = vector.load %arg4[%c0_12, %c0_13, %c1_14] : memref<1x4x18xf32, #tpu.memory_space<vmem>>, vector<1x4x16xf32>
    %8 = vector.shape_cast %7 : vector<1x4x16xf32> to vector<4x16xf32>
    %c0_15 = arith.constant 0 : index
    %c0_16 = arith.constant 0 : index
    %c2 = arith.constant 2 : index
    %9 = vector.load %arg4[%c0_15, %c0_16, %c2] : memref<1x4x18xf32, #tpu.memory_space<vmem>>, vector<1x4x16xf32>
    %10 = vector.shape_cast %9 : vector<1x4x16xf32> to vector<4x16xf32>
    %11 = tpu.concatenate %6, %8, %10 in 0 : vector<4x16xf32>, vector<4x16xf32>, vector<4x16xf32> -> vector<12x16xf32>
    %cst_17 = arith.constant dense<0.000000e+00> : vector<8x16xf32>
    %12 = tpu.matmul %4, %11, %cst_17 {dimension_numbers = #tpu.dot_dimension_numbers<[1], [0], [0], [1], [0, 0, 1, 1], [], []>} : vector<8x12xf32>, vector<12x16xf32>, vector<8x16xf32> -> vector<8x16xf32>
    %cst_18 = arith.constant 0.000000e+00 : f32
    %13 = vector.broadcast %cst_18 : f32 to vector<8x16xf32>
    %14 = arith.maximumf %12, %13 : vector<8x16xf32>
    %c0_19 = arith.constant 0 : index
    %c0_20 = arith.constant 0 : index
    %c0_21 = arith.constant 0 : index
    %15 = vector.load %arg3[%c0_19, %c0_20, %c0_21] : memref<1x8x16xf32, #tpu.memory_space<vmem>>, vector<1x8x16xf32>
    %16 = vector.shape_cast %15 : vector<1x8x16xf32> to vector<8x16xf32>
    %17 = vector.shape_cast %14 : vector<8x16xf32> to vector<1x8x16xf32>
    tpu.vector_store %arg3[%c0_19, %c0_20, %c0_21], %17 {strides = array<i32>} : memref<1x8x16xf32, #tpu.memory_space<vmem>>, vector<1x8x16xf32>,
    return
  }
  func.func @transform_0(%arg0: i32) -> (i32, i32, i32) {
    %c0_i32 = arith.constant 0 : i32
    %c0_i32_0 = arith.constant 0 : i32
    %c0_i32_1 = arith.constant 0 : i32
    return %arg0, %c0_i32, %c0_i32_0 : i32, i32, i32
  }
  func.func @transform_1(%arg0: i32) -> (i32, i32) {
    %c0_i32 = arith.constant 0 : i32
    %c0_i32_0 = arith.constant 0 : i32
    %c0_i32_1 = arith.constant 0 : i32
    return %c0_i32, %c0_i32_0 : i32, i32
  }
  func.func @transform_2(%arg0: i32) -> (i32, i32, i32) {
    %c0_i32 = arith.constant 0 : i32
    %c0_i32_0 = arith.constant 0 : i32
    %c0_i32_1 = arith.constant 0 : i32
    return %arg0, %c0_i32, %c0_i32_0 : i32, i32, i32
  }
}

</mosaic_0001>

<llo_original>
// kernel: tpu_custom_call.1
$region0: #{tpu_custom_call.1}
  #allocation0 [shape = 'u32[]', space=smem, size = 0x4, offset = 0x4, fixed_abs, tag = 'smem constant byte address 0x4 - core index']
  #allocation1 [shape = 'u32[144,128]{1,0:T(1,128)}', space=vmem, size = 0x12000, scoped, tag = 'internal scratch']
  #allocation2 [shape = 'f32[1,4,18]{2,1,0:T(4,128)}', space=vmem, size = 0x800, scoped, tag = 'scratch operand']
  %s0 = inlined_call_operand.hbm [shape: f32[2,4,16], index: 0, kind: input, shape index: {}]
  %s1 = inlined_call_operand.hbm [shape: f32[8,12], index: 1, kind: input, shape index: {}]
  %s2 = inlined_call_operand.hbm [shape: f32[2,8,16], index: 2, kind: output, shape index: {}]
  %s3 = sld [smem:[#allocation0]]
  $region49: #{tpu_custom_call.1} parent=0
    _
  %s5 = ssub.s32 1, %s3
  %s6 = scalar_select 0, %s5, %s3
  $region1: #{tpu_custom_call.1} parent=0
    #allocation3 [shape = 'u8[4096]{0}', space=vmem, size = 0x1000, scoped, tag = 'input window, operand 0']
    #allocation4 [shape = 's32[2]{0}', space=sflag, size = 0x8, scoped, tag = 'scoped memory for tpu_custom_call.1']
    #allocation5 [shape = 's32[2]{0}', space=sflag, size = 0x8, scoped, tag = 'scoped memory for tpu_custom_call.1']
    #allocation6 [shape = 'u8[4096]{0}', space=vmem, size = 0x1000, scoped, tag = 'input window, operand 1, single buffered']
    #allocation7 [shape = 's32[1]{0}', space=sflag, size = 0x4, scoped, tag = 'scoped memory for tpu_custom_call.1']
    #allocation8 [shape = 'u8[8192]{0}', space=vmem, size = 0x2000, scoped, tag = 'output window, operand 0']
    %7 = vsyncpa [#allocation4], 0
    %s8 = scalar_lea.sflag [#allocation4], 1
    %9 = vsyncpa %s8, 0
    %10 = vsyncpa [#allocation7], 0
    %11 = vsyncpa [#allocation5], 0
    %s12 = scalar_lea.sflag [#allocation5], 1
    %13 = vsyncpa %s12, 0
    loop: start=0, step=1, limit=4
    $region2: #{tpu_custom_call.1} parent=1 // loop_pre_header
      _
    $region3: #{tpu_custom_call.1} parent=1 // loop_header
      %s15 = sphi 0, %s19
      %p16 = scmp.ge.s32.totalorder %s15, 4
      %s25 = sphi 0, %s27
      %s28 = sphi 0, %s25
      %s29 = sphi 0, %s28
      %s45 = sphi 0, %s29
      %s49 = sphi 0, %s49
      %s51 = sphi 0, %s49
      %s52 = sphi 0, %s51
      %s66 = sphi 0, %s52
      %s72 = sphi 0, %s74
      %s75 = sphi 0, %s72
      %s76 = sphi 0, %s75
      %s92 = sphi 0, %s76
    $region4: #{tpu_custom_call.1} parent=1 // loop_header_branch
      %18 = sbr.rel (%p16) target = $region8
    $region5: #{tpu_custom_call.1} parent=1 // loop_body
      %s20 = ssub.s32 %s15, 1
      %s21 = ssub.s32 %s15, 2
      %s22 = sadd.s32 %s15, 1
      %s23 = ssub.s32 %s15, %s22
      %p24 = scmp.eq.s32.totalorder %s23, 0
      %s26 = sadd.s32 %s25, 1
      %s27 = scalar_select %p24, %s25, %s26
      %p30 = pneg %p24
      %p31 = scmp.eq.s32.totalorder %s15, 1
      %p32 = por %p30, %p31
      %p33 = scmp.ne.s32.totalorder %s25, %s28
      %p34 = scmp.eq.s32.totalorder %s15, 0
      %p35 = por %p33, %p34
      %p36 = scmp.ne.s32.totalorder %s25, %s28
      %p37 = scmp.eq.s32.totalorder %s20, 1
      %p38 = por %p36, %p37
      %p39 = scmp.ne.s32.totalorder %s28, %s29
      %p40 = scmp.eq.s32.totalorder %s20, 0
      %p41 = por %p39, %p40
      %p42 = scmp.ne.s32.totalorder %s28, %s29
      %p43 = scmp.eq.s32.totalorder %s21, 1
      %p44 = por %p42, %p43
      %p46 = scmp.ne.s32.totalorder %s29, %s45
      %p47 = scmp.eq.s32.totalorder %s21, 0
      %p48 = por %p46, %p47
      %s50 = sadd.s32 %s49, 1
      %p53 = scmp.eq.s32.totalorder %s15, 1
      %p54 = scmp.ne.s32.totalorder %s49, %s51
      %p55 = scmp.eq.s32.totalorder %s15, 0
      %p56 = por %p54, %p55
      %p57 = scmp.ne.s32.totalorder %s49, %s51
      %p58 = scmp.eq.s32.totalorder %s20, 1
      %p59 = por %p57, %p58
      %p60 = scmp.ne.s32.totalorder %s51, %s52
      %p61 = scmp.eq.s32.totalorder %s20, 0
      %p62 = por %p60, %p61
      %p63 = scmp.ne.s32.totalorder %s51, %s52
      %p64 = scmp.eq.s32.totalorder %s21, 1
      %p65 = por %p63, %p64
      %p67 = scmp.ne.s32.totalorder %s52, %s66
      %p68 = scmp.eq.s32.totalorder %s21, 0
      %p69 = por %p67, %p68
      %s70 = ssub.s32 %s15, %s22
      %p71 = scmp.eq.s32.totalorder %s70, 0
      %s73 = sadd.s32 %s72, 1
      %s74 = scalar_select %p71, %s72, %s73
      %p77 = pneg %p71
      %p78 = scmp.eq.s32.totalorder %s15, 1
      %p79 = por %p77, %p78
      %p80 = scmp.ne.s32.totalorder %s72, %s75
      %p81 = scmp.eq.s32.totalorder %s15, 0
      %p82 = por %p80, %p81
      %p83 = scmp.ne.s32.totalorder %s72, %s75
      %p84 = scmp.eq.s32.totalorder %s20, 1
      %p85 = por %p83, %p84
      %p86 = scmp.ne.s32.totalorder %s75, %s76
      %p87 = scmp.eq.s32.totalorder %s20, 0
      %p88 = por %p86, %p87
      %p89 = scmp.ne.s32.totalorder %s75, %s76
      %p90 = scmp.eq.s32.totalorder %s21, 1
      %p91 = por %p89, %p90
      %p93 = scmp.ne.s32.totalorder %s76, %s92
      %p94 = scmp.eq.s32.totalorder %s21, 0
      %p95 = por %p93, %p94
      %p96 = scmp.le.s32.totalorder 1, %s15
      %p97 = scmp.lt.s32.totalorder %s15, 3
      %p98 = pnand %p96, %p97
      %p99 = pneg %p98
      // Predicated region
      $region9: #{tpu_custom_call.1} parent=5 // pred_check
        _
      $region10: #{tpu_custom_call.1} parent=5 // pred_check_branch
        %101 = sbr.rel (%p98) target = $region12
      $region11: #{tpu_custom_call.1} parent=5 // pred_region
        %s102 = ssub.s32 %s15, 1
        // Predicated region
        $region13: #{tpu_custom_call.1} parent=11 // pred_check
          %p103 = pneg %p62
        $region14: #{tpu_custom_call.1} parent=11 // pred_check_branch
          %105 = sbr.rel (%p103) target = $region16
        $region15: #{tpu_custom_call.1} parent=11 // pred_region
          %s107 = ssub.s32 128, 128
          %108 = vsyncadd [#allocation7], %s107
          %s110 = sshll.u32 [#allocation6], 4
          %s111 = int_to_ptr.vmem [resolvable:$true] %s110
          %113 = dma.hbm_to_vmem [thread:$0]  %s1, 128, %s111, [#allocation7]
        $region16: #{tpu_custom_call.1} parent=11 // pred_fallthru
          _
      $region12: #{tpu_custom_call.1} parent=5 // pred_fallthru
        _
      %p114 = scmp.lt.s32.totalorder %s15, 2
      // Predicated region
      $region17: #{tpu_custom_call.1} parent=5 // pred_check
        %p115 = pneg %p114
      $region18: #{tpu_custom_call.1} parent=5 // pred_check_branch
        %117 = sbr.rel (%p115) target = $region20
      $region19: #{tpu_custom_call.1} parent=5 // pred_region
        // Predicated region
        $region21: #{tpu_custom_call.1} parent=19 // pred_check
          %p118 = pneg %p35
        $region22: #{tpu_custom_call.1} parent=19 // pred_check_branch
          %120 = sbr.rel (%p118) target = $region24
        $region23: #{tpu_custom_call.1} parent=19 // pred_region
          %s121 = sand.u32 %s25, 1
          %s122 = scalar_lea.sflag [#allocation4], %s121
          %s123 = sand.u32 %s25, 1
          %s124 = smul.addr %s123, 4
          %s125 = scalar_lea.vmem [#allocation3], %s124
          %s127 = ssub.s32 64, 64
          %128 = vsyncadd %s122, %s127
          %s129 = smul.addr %s15, 64
          %s130 = scalar_lea.hbm %s0, %s129
          %s132 = sshll.u32 %s125, 4
          %s133 = int_to_ptr.vmem [resolvable:$true] %s132
          %135 = dma.hbm_to_vmem [thread:$0]  %s130, 64, %s133, %s122
        $region24: #{tpu_custom_call.1} parent=19 // pred_fallthru
          _
      $region20: #{tpu_custom_call.1} parent=5 // pred_fallthru
        _
      %p136 = scmp.le.s32.totalorder 1, %s15
      %p137 = scmp.lt.s32.totalorder %s15, 3
      %p138 = pnand %p136, %p137
      %p139 = pneg %p138
      // Predicated region
      $region25: #{tpu_custom_call.1} parent=5 // pred_check
        _
      $region26: #{tpu_custom_call.1} parent=5 // pred_check_branch
        %141 = sbr.rel (%p138) target = $region28
      $region27: #{tpu_custom_call.1} parent=5 // pred_region
        %s142 = ssub.s32 %s15, 1
        %s143 = sand.u32 %s28, 1
        %s144 = scalar_lea.sflag [#allocation4], %s143
        %s145 = sand.u32 %s28, 1
        %s146 = smul.addr %s145, 4
        %s147 = scalar_lea.vmem [#allocation3], %s146
        // Predicated region
        $region29: #{tpu_custom_call.1} parent=27 // pred_check
          %p148 = pneg %p41
        $region30: #{tpu_custom_call.1} parent=27 // pred_check_branch
          %150 = sbr.rel (%p148) target = $region32
        $region31: #{tpu_custom_call.1} parent=27 // pred_region
          %151 = dma.done %s144, 64
        $region32: #{tpu_custom_call.1} parent=27 // pred_fallthru
          _
        // Predicated region
        $region33: #{tpu_custom_call.1} parent=27 // pred_check
          %p152 = pneg %p62
        $region34: #{tpu_custom_call.1} parent=27 // pred_check_branch
          %154 = sbr.rel (%p152) target = $region36
        $region35: #{tpu_custom_call.1} parent=27 // pred_region
          %155 = dma.done [#allocation7], 128
        $region36: #{tpu_custom_call.1} parent=27 // pred_fallthru
          _
        %s156 = sand.u32 %s28, 1
        %s157 = scalar_lea.sflag [#allocation4], %s156
        %s158 = sand.u32 %s28, 1
        %s159 = smul.addr %s158, 4
        %s160 = scalar_lea.vmem [#allocation3], %s159
        %p161 = pneg %p41
        %p162 = pneg %p38
        %p163 = pneg %p62
        %p164 = pneg %p59
        %p165 = pneg %p88
        %p166 = pneg %p85
        %s167 = sand.u32 %s75, 1
        %s168 = scalar_lea.sflag [#allocation5], %s167
        %s169 = sand.u32 %s75, 1
        %s170 = smul.addr %s169, 8
        %s171 = scalar_lea.vmem [#allocation8], %s170
        %vm172 = vcmask 142336
        %173 = vst.msk [vmem:[#allocation2] sm:$0xf] %vm172, 0.0
        %v174 = vld [vmem:[%s147] sm:$0xf]
        %176 = vrot.lane.b32.xlu0 %v174, 1
        %v177 = vpop.permute.xlu0 %176
        %vm179 = vcmask 134152
        %180 = vst.msk [vmem:[#allocation2] sm:$0xf] %vm179, %v177
        %v181 = vld [vmem:[#allocation6] sm:$0xff]
        %v182 = vld [vmem:[#allocation2] sm:$0xf]
        %v184 = vrot.slane %v182, 4
        %185 = vrot.lane.b32.xlu0 %v184, 127
        %v186 = vpop.permute.xlu0 %185
        %188 = vrot.lane.b32.xlu0 %v182, 126
        %v189 = vpop.permute.xlu0 %188
        %vm190 = vcmask 1043456
        %v191 = vsel %vm190, %v182, %v186
        %vm192 = vcmask 97280
        %v194 = vsel %vm192, %v181, 0
        %v196 = vsel %vm190, %v189, 0
        %198 = vmatprep.subr.mxu0 0.0
        %199 = vmatpush1.msra.mxu0 %v191
        %200 = vmatprep.subr.mxu0 0.0
        %201 = vmatpush1.msra.mxu0 %v196
        %202 = vmatprep.subr.mxu0 0.0
        %203 = vmatpush1.msra.mxu0 0.0
        %204 = vmatprep.subr.mxu0 0.0
        %205 = vmatpush1.msra.mxu0 0.0
        %206 = vmatprep.subr.mxu0 0.0
        %207 = vmatpush1.msra.mxu0 0.0
        %208 = vmatprep.subr.mxu0 0.0
        %209 = vmatpush1.msra.mxu0 0.0
        %210 = vmatprep.subr.mxu0 0.0
        %211 = vmatpush1.msra.mxu0 0.0
        %212 = vmatprep.subr.mxu0 0.0
        %213 = vmatpush1.msra.mxu0 0.0
        %214 = vmatprep.subr.mxu0 0.0
        %215 = vmatpush1.msra.mxu0 0.0
        %216 = vmatprep.subr.mxu0 0.0
        %217 = vmatpush1.msra.mxu0 0.0
        %218 = vmatprep.subr.mxu0 0.0
        %219 = vmatpush1.msra.mxu0 0.0
        %220 = vmatprep.subr.mxu0 0.0
        %221 = vmatpush1.msra.mxu0 0.0
        %222 = vmatprep.subr.mxu0 0.0
        %223 = vmatpush1.msra.mxu0 0.0
        %224 = vmatprep.subr.mxu0 0.0
        %225 = vmatpush1.msra.mxu0 0.0
        %226 = vmatprep.subr.mxu0 0.0
        %227 = vmatpush1.msra.mxu0 0.0
        %228 = vmatprep.subr.mxu0 0.0
        %229 = vmatpush1.msra.mxu0 0.0
        %230 = vmatprep.subr.mxu0 0.0
        %231 = vmatpush1.msra.mxu0 0.0
        %232 = vmatprep.subr.mxu0 0.0
        %233 = vmatpush1.msra.mxu0 0.0
        %234 = vmatprep.subr.mxu0 0.0
        %235 = vmatpush1.msra.mxu0 0.0
        %236 = vmatprep.subr.mxu0 0.0
        %237 = vmatpush1.msra.mxu0 0.0
        %238 = vmatprep.subr.mxu0 0.0
        %239 = vmatpush1.msra.mxu0 0.0
        %240 = vmatprep.subr.mxu0 0.0
        %241 = vmatpush1.msra.mxu0 0.0
        %242 = vmatprep.subr.mxu0 0.0
        %243 = vmatpush1.msra.mxu0 0.0
        %244 = vmatprep.subr.mxu0 0.0
        %245 = vmatpush1.msra.mxu0 0.0
        %246 = vmatprep.subr.mxu0 0.0
        %247 = vmatpush1.msra.mxu0 0.0
        %248 = vmatprep.subr.mxu0 0.0
        %249 = vmatpush1.msra.mxu0 0.0
        %250 = vmatprep.subr.mxu0 0.0
        %251 = vmatpush1.msra.mxu0 0.0
        %252 = vmatprep.subr.mxu0 0.0
        %253 = vmatpush1.msra.mxu0 0.0
        %254 = vmatprep.subr.mxu0 0.0
        %255 = vmatpush1.msra.mxu0 0.0
        %256 = vmatprep.subr.mxu0 0.0
        %257 = vmatpush1.msra.mxu0 0.0
        %258 = vmatprep.subr.mxu0 0.0
        %259 = vmatpush1.msra.mxu0 0.0
        %260 = vmatprep.subr.mxu0 0.0
        %261 = vmatpush1.msra.mxu0 0.0
        %262 = vmatprep.mubr.f32.mxu0 0.0
        %263 = vmatmul.mubr.f32.gmra.mrb[0].mxu0 %v194
        %v264 = vpop.f32.mrb[0].mxu0
        %v265 = vadd.f32 0.0, %v264
        %v266 = vpop.f32.mrb[0].mxu0
        %267 = vdwg.mxu0
        %v268 = vmax.f32 %v265, 0.0
        %vm269 = vcmask 130048
        %270 = vst.msk [vmem:[%s171] sm:$0xff] %vm269, %v268
        %s271 = sand.u32 %s75, 1
        %s272 = scalar_lea.sflag [#allocation5], %s271
        %s273 = sand.u32 %s75, 1
        %s274 = smul.addr %s273, 8
        %s275 = scalar_lea.vmem [#allocation8], %s274
        // Predicated region
        $region37: #{tpu_custom_call.1} parent=27 // pred_check
          %p276 = pneg %p85
        $region38: #{tpu_custom_call.1} parent=27 // pred_check_branch
          %278 = sbr.rel (%p276) target = $region40
        $region39: #{tpu_custom_call.1} parent=27 // pred_region
          %s280 = ssub.s32 128, 128
          %281 = vsyncadd %s272, %s280
          %s282 = smul.addr %s20, 128
          %s283 = scalar_lea.hbm %s2, %s282
          %s285 = sshll.u32 %s275, 4
          %s286 = int_to_ptr.vmem [resolvable:$true] %s285
          %288 = dma.vmem_to_hbm [thread:$0]  %s286, 128, %s283, %s272
        $region40: #{tpu_custom_call.1} parent=27 // pred_fallthru
          _
      $region28: #{tpu_custom_call.1} parent=5 // pred_fallthru
        _
      %p289 = scmp.le.s32.totalorder 2, %s15
      // Predicated region
      $region41: #{tpu_custom_call.1} parent=5 // pred_check
        %p290 = pneg %p289
      $region42: #{tpu_custom_call.1} parent=5 // pred_check_branch
        %292 = sbr.rel (%p290) target = $region44
      $region43: #{tpu_custom_call.1} parent=5 // pred_region
        %s293 = ssub.s32 %s15, 2
        // Predicated region
        $region45: #{tpu_custom_call.1} parent=43 // pred_check
          %p294 = pneg %p91
        $region46: #{tpu_custom_call.1} parent=43 // pred_check_branch
          %296 = sbr.rel (%p294) target = $region48
        $region47: #{tpu_custom_call.1} parent=43 // pred_region
          %s297 = sand.u32 %s76, 1
          %s298 = scalar_lea.sflag [#allocation5], %s297
          %s299 = sand.u32 %s76, 1
          %s300 = smul.addr %s299, 8
          %s301 = scalar_lea.vmem [#allocation8], %s300
          %302 = dma.done %s298, 128
        $region48: #{tpu_custom_call.1} parent=43 // pred_fallthru
          _
      $region44: #{tpu_custom_call.1} parent=5 // pred_fallthru
        _
    $region6: #{tpu_custom_call.1} parent=1 // loop_footer
      %s19 = sadd.s32 1, %s15
    $region7: #{tpu_custom_call.1} parent=1 // loop_footer_branch
      %14 = sbr.rel target = $region3
    $region8: #{tpu_custom_call.1} parent=1 // loop_exit
      _
    %303 = vsyncpa [#allocation4], 1
    %s304 = scalar_lea.sflag [#allocation4], 1
    %305 = vsyncpa %s304, 1
    %306 = vsyncpa [#allocation7], 1
    %307 = vsyncpa [#allocation5], 1
    %s308 = scalar_lea.sflag [#allocation5], 1
    %309 = vsyncpa %s308, 1

</llo_original>
